<compile_context>
chip_gen: v7x
topology: tpu7x:2x2x1
jax: 0.10.0
libtpu: 0.0.40
codegen_flags: <defaults>
</compile_context>

<pallas_src>
import functools
import math

import jax
import jax.numpy as jnp
from jax.experimental import pallas as pl
from jax.experimental.pallas import tpu as pltpu

_LANE = 128
_SUBLANE = 8


def _round_up(n: int, m: int) -> int:
    return (n + m - 1) // m * m


def _ceil_div(a: int, b: int) -> int:
    return -(-a // b)


# ----------------------------------------------------------------------------
# Kernel
# ----------------------------------------------------------------------------
def _decoder_linear_kernel(x_ref, w_ref, b_ref, o_ref, *, use_log_softmax: bool):
    # x_ref: (tm, E) compute dtype; w_ref: (E, S_pad) compute dtype (plain K,N
    # layout -> S in lanes, matches the output layout, no per-step transpose);
    # b_ref: (1, S_pad) f32; o_ref: (tm, S_pad).
    y = jnp.dot(x_ref[...], w_ref[...], preferred_element_type=jnp.float32)
    y = y + b_ref[...]  # (tm, S_pad) + (1, S_pad), f32
    if use_log_softmax:
        # Numerically stable log-softmax over the full (un-tiled) S dimension.
        # Padded columns carry bias = -inf -> exp() contributes 0 to the sum.
        m = jnp.max(y, axis=-1, keepdims=True)
        z = y - m
        lse = jnp.log(jnp.sum(jnp.exp(z), axis=-1, keepdims=True))
        y = z - lse
    o_ref[...] = y.astype(o_ref.dtype)


# ----------------------------------------------------------------------------
# VMEM sizing / tile choice (generation aware)
# ----------------------------------------------------------------------------
def _vmem_capacity_bytes() -> int:
    try:
        info = pltpu.get_tpu_info()
        cap = getattr(info, "vmem_capacity_bytes", None)
        if cap:
            return int(cap)
    except Exception:
        pass
    return 64 * 1024 * 1024  # conservative: assume v7x-sized VMEM


def _vmem_budget_and_cap():
    capacity = _vmem_capacity_bytes()
    if capacity >= 96 * 1024 * 1024:
        # v5e / v6e: 128 MiB physical VMEM -> big tiles, weight easily resident.
        return 96 * 1024 * 1024, 100 * 1024 * 1024
    # v7x: 64 MiB per TensorCore -> leave headroom for compiler scratch,
    # epilogue temporaries and DMA descriptors.
    return 36 * 1024 * 1024, 46 * 1024 * 1024


def _vmem_bytes(tm, *, E, S_pad, x_isz, w_isz, out_isz, use_log_softmax, w_bufs):
    x_b = 2 * tm * E * x_isz                       # double-buffered x tiles
    o_b = 2 * tm * S_pad * out_isz                 # double-buffered out tiles
    w_b = w_bufs * (S_pad * E * w_isz + S_pad * 4)  # resident weight + bias
    # log-softmax epilogue keeps ~3 f32 tiles live (y, z, exp(z)).
    epi = (3 if use_log_softmax else 1) * tm * S_pad * 4
    return x_b + o_b + w_b + epi


def _plan_tiles(M, E, S_pad, x_isz, w_isz, out_isz, use_log_softmax, budget):
    """Pick tm (multiple of 128 when possible) under the VMEM budget."""
    M8 = _round_up(max(M, 1), _SUBLANE)
    cap = min(512, M8)
    if M8 >= 2 * _LANE:
        # Guarantee >= 2 row tiles so both v7x TensorCores get work.
        cap = min(cap, max(_LANE, _round_up(_ceil_div(M8, 2), _LANE)))

    need = functools.partial(
        _vmem_bytes, E=E, S_pad=S_pad, x_isz=x_isz, w_isz=w_isz,
        out_isz=out_isz, use_log_softmax=use_log_softmax, w_bufs=1)

    if cap >= _LANE:
        tm = (cap // _LANE) * _LANE          # step 512 -> 384 -> 256 -> 128
        while tm > _LANE and need(tm) > budget:
            tm -= _LANE
    else:
        tm = cap
    while tm > _SUBLANE and need(tm) > budget:   # only below 128: 8-granularity
        tm -= _SUBLANE
    tm = max(tm, _SUBLANE)
    return tm, need(tm) <= budget


# ----------------------------------------------------------------------------
# Layer wrapper (parameters prepared once, like the nn.Module)
# ----------------------------------------------------------------------------
class DecoderLinearLayer:
    """y = x @ W^T + b, optionally log_softmax over the last dim."""

    def __init__(self, weight, bias, *, use_log_softmax: bool = False,
                 compute_dtype=jnp.bfloat16, out_dtype=None):
        S, E = weight.shape
        self.S, self.E = int(S), int(E)
        self.use_log_softmax = bool(use_log_softmax)
        self.compute_dtype = jnp.dtype(compute_dtype)
        self.out_dtype = out_dtype

        S_pad = _round_up(self.S, _LANE)
        self.S_pad = S_pad

        w = jnp.asarray(weight, jnp.float32)
        b = jnp.asarray(bias, jnp.float32)
        if S_pad != S:
            w = jnp.pad(w, ((0, S_pad - S), (0, 0)))
            pad_val = float("-inf") if use_log_softmax else 0.0
            b = jnp.pad(b, (0, S_pad - S), constant_values=pad_val)
        # One-time pad + transpose + cast (hoisted out of the per-call path).
        # (E, S_pad) layout -> plain (K, N) MXU contraction inside the kernel.
        self.w_es = jnp.asarray(w.T, dtype=self.compute_dtype)
        self.b_1s = b.reshape(1, S_pad)  # kept f32 so -inf padding is exact

    # -- fused XLA fallback (tiny problems / non-resident weights) -----------
    def _xla(self, x, out_dtype):
        w = self.w_es[:, :self.S].astype(jnp.float32)       # (E, S)
        b = self.b_1s[0, :self.S]
        y = jnp.einsum("...e,es->...s", x.astype(jnp.float32), w) + b
        if self.use_log_softmax:
            y = jax.nn.log_softmax(y, axis=-1)
        return y.astype(out_dtype)

    # -- Pallas path ----------------------------------------------------------
    def _run_pallas(self, x2d, tm, out_dtype, vmem_cap):
        M, E = x2d.shape
        S_pad = self.S_pad
        x_isz = self.compute_dtype.itemsize
        w_isz = self.compute_dtype.itemsize
        o_isz = jnp.dtype(out_dtype).itemsize
        num_m = _ceil_div(M, tm)

        # Limit covers the worst case (default double-buffered resident weight)
        # when it fits under the generation cap, so the non-Buffered fallback
        # below still compiles.
        need2 = _vmem_bytes(tm, E=E, S_pad=S_pad, x_isz=x_isz, w_isz=w_isz,
                            out_isz=o_isz, use_log_softmax=self.use_log_softmax,
                            w_bufs=2)
        vmem_limit = int(min(vmem_cap, max(need2 + (4 << 20), 16 << 20)))

        flops = 2 * M * S_pad * E
        transc = M * S_pad if self.use_log_softmax else 0
        bytes_acc = (M * E * x_isz + S_pad * E * w_isz + S_pad * 4
                     + M * S_pad * o_isz)
        cost = pl.CostEstimate(flops=flops, transcendentals=transc,
                               bytes_accessed=bytes_acc)

        kernel = functools.partial(_decoder_linear_kernel,
                                   use_log_softmax=self.use_log_softmax)

        def call(single_buffer_resident: bool):
            # Constant index_map: the weight/bias are fetched once; Buffered(1)
            # avoids allocating a second (dead) buffer for them.
            extra = ({"pipeline_mode": pl.Buffered(1)}
                     if single_buffer_resident else {})
            return pl.pallas_call(
                kernel,
                out_shape=jax.ShapeDtypeStruct((M, S_pad), out_dtype),
                grid=(num_m,),
                in_specs=[
                    pl.BlockSpec((tm, E), lambda i: (i, 0)),            # streamed
                    pl.BlockSpec((E, S_pad), lambda i: (0, 0), **extra),  # resident
                    pl.BlockSpec((1, S_pad), lambda i: (0, 0), **extra),  # resident
                ],
                out_specs=pl.BlockSpec((tm, S_pad), lambda i: (i, 0)),
                compiler_params=pltpu.CompilerParams(
                    dimension_semantics=("parallel",),  # megacore sharding on v7x
                    vmem_limit_bytes=vmem_limit,
                ),
                cost_estimate=cost,
            )(x2d, self.w_es, self.b_1s)

        # Robustness: if pipeline_mode/Buffered(1) is unavailable in this JAX
        # build, retry with default buffering (eager execution -> safe here).
        try:
            return call(True)
        except Exception:
            return call(False)

    def __call__(self, x, *, force_pallas: bool = False, tile_m=None):
        *lead, E = x.shape
        assert E == self.E, f"expected last dim {self.E}, got {E}"
        M = int(math.prod(lead)) if lead else 1
        out_dtype = self.out_dtype if self.out_dtype is not None else x.dtype

        # Tiny problems: the fixed per-call cost dominates; let XLA fuse it.
        if not force_pallas and M * self.S_pad < 128 * 512:
            return self._xla(x, out_dtype)

        budget, vmem_cap = _vmem_budget_and_cap()
        x_isz = self.compute_dtype.itemsize
        w_isz = self.compute_dtype.itemsize
        o_isz = jnp.dtype(out_dtype).itemsize
        tm, fits = _plan_tiles(M, E, self.S_pad, x_isz, w_isz, o_isz,
                               self.use_log_softmax, budget)
        if tile_m is not None:
            tm = int(tile_m)

        if not fits and not force_pallas:
            # Resident weight does not fit VMEM -> fused XLA.
            # TODO(synk): S-tiled streamed-weight online-logsumexp path for
            # vocab-sized heads.
            return self._xla(x, out_dtype)

        x2d = x.reshape(M, E).astype(self.compute_dtype)
        out2d = self._run_pallas(x2d, tm, out_dtype, vmem_cap)
        if self.S_pad != self.S:
            out2d = out2d[:, :self.S]
        return out2d.reshape(*lead, self.S)


# ----------------------------------------------------------------------------
# Pure-JAX reference (f32)
# ----------------------------------------------------------------------------
def reference_forward(x, weight, bias, use_log_softmax):
    y = jnp.einsum("...e,se->...s", x, weight) + bias
    if use_log_softmax:
        y = jax.nn.log_softmax(y, axis=-1)
    return y


# ----------------------------------------------------------------------------
# Test harness
# ----------------------------------------------------------------------------
if __name__ == "__main__":
    key = jax.random.PRNGKey(0)
    kx, kw, kb, kx2 = jax.random.split(key, 4)

    batch, seq = 2, 8
    embedding_dim = 32
    spectrum_range = 64

    x = jax.random.normal(kx, (batch, seq, embedding_dim), dtype=jnp.float32)

    # Deterministic params mimicking nn.Linear's uniform(-1/sqrt(E), 1/sqrt(E)).
    bound = 1.0 / math.sqrt(embedding_dim)
    weight = jax.random.uniform(kw, (spectrum_range, embedding_dim),
                                minval=-bound, maxval=bound, dtype=jnp.float32)
    bias = jax.random.uniform(kb, (spectrum_range,),
                              minval=-bound, maxval=bound, dtype=jnp.float32)

    ok = True
    for use_log_softmax in (False, True):
        ref = reference_forward(x, weight, bias, use_log_softmax)

        # Exact f32 compute path (tight tolerance), Pallas forced.
        layer_f32 = DecoderLinearLayer(weight, bias,
                                       use_log_softmax=use_log_softmax,
                                       compute_dtype=jnp.float32)
        out = jax.block_until_ready(layer_f32(x, force_pallas=True))
        if out.shape != (batch, seq, spectrum_range):
            ok = False
        if not jnp.allclose(out, ref, atol=1e-5, rtol=1e-5):
            ok = False

        # bf16 compute path (MXU native rate, halved HBM/VMEM traffic) with
        # f32 accumulate + f32 epilogue; looser tolerance vs the f32 reference.
        layer_bf16 = DecoderLinearLayer(weight, bias,
                                        use_log_softmax=use_log_softmax,
                                        compute_dtype=jnp.bfloat16)
        out_bf = jax.block_until_ready(layer_bf16(x, force_pallas=True))
        if out_bf.shape != (batch, seq, spectrum_range):
            ok = False
        if not jnp.allclose(out_bf.astype(jnp.float32), ref, atol=5e-2, rtol=5e-2):
            ok = False
        if not jnp.all(jnp.isfinite(out_bf.astype(jnp.float32))):
            ok = False

        # Tail-tile check: M = 3*7 = 21 not a multiple of the forced tile (8);
        # valid rows must be uncontaminated by the out-of-bounds tail rows.
        x_tail = jax.random.normal(kx2, (3, 7, embedding_dim), dtype=jnp.float32)
        ref_t = reference_forward(x_tail, weight, bias, use_log_softmax)
        out_t = jax.block_until_ready(
            layer_f32(x_tail, force_pallas=True, tile_m=8))
        if not jnp.allclose(out_t, ref_t, atol=1e-5, rtol=1e-5):
            ok = False

        # Auto-dispatch path (falls back to fused XLA at these tiny shapes).
        out_auto = jax.block_until_ready(layer_f32(x))
        if not jnp.allclose(out_auto, ref, atol=1e-5, rtol=1e-5):
            ok = False

    if ok:
        print("KERNEL_OK")
    else:
        print("KERNEL_FAILED")
</pallas_src>

<mosaic_0001>
module attributes {stable_mosaic.version = 11 : i64} {
  func.func @_decoder_linear_kernel(%arg0: i32, %arg1: memref<16x32xf32, #tpu.memory_space<vmem>>, %arg2: memref<32x128xf32, #tpu.memory_space<vmem>>, %arg3: memref<1x128xf32, #tpu.memory_space<vmem>>, %arg4: memref<16x128xf32, #tpu.memory_space<vmem>>) attributes {dimension_semantics = [#tpu.dimension_semantics<parallel>], iteration_bounds = array<i64: 1>, scalar_prefetch = 0 : i64, scratch_operands = 0 : i64, tpu.core_type = #tpu.core_type<tc>, window_params = [{transform_indices = @transform_0, window_bounds = array<i64: 16, 32>}, {pipeline_mode = #tpu.pipeline_mode<synchronous>, transform_indices = @transform_1, window_bounds = array<i64: 32, 128>}, {pipeline_mode = #tpu.pipeline_mode<synchronous>, transform_indices = @transform_2, window_bounds = array<i64: 1, 128>}, {transform_indices = @transform_3, window_bounds = array<i64: 16, 128>}]} {
    %c0 = arith.constant 0 : index
    %c0_0 = arith.constant 0 : index
    %0 = vector.load %arg1[%c0, %c0_0] : memref<16x32xf32, #tpu.memory_space<vmem>>, vector<16x32xf32>
    %c0_1 = arith.constant 0 : index
    %c0_2 = arith.constant 0 : index
    %1 = vector.load %arg2[%c0_1, %c0_2] : memref<32x128xf32, #tpu.memory_space<vmem>>, vector<32x128xf32>
    %cst = arith.constant dense<0.000000e+00> : vector<16x128xf32>
    %2 = tpu.matmul %0, %1, %cst {dimension_numbers = #tpu.dot_dimension_numbers<[1], [0], [0], [1], [0, 0, 1, 1], [], []>} : vector<16x32xf32>, vector<32x128xf32>, vector<16x128xf32> -> vector<16x128xf32>
    %c0_3 = arith.constant 0 : index
    %c0_4 = arith.constant 0 : index
    %3 = vector.load %arg3[%c0_3, %c0_4] : memref<1x128xf32, #tpu.memory_space<vmem>>, vector<1x128xf32>
    %4 = vector.broadcast %3 : vector<1x128xf32> to vector<16x128xf32>
    %5 = arith.addf %2, %4 : vector<16x128xf32>
    %c0_5 = arith.constant 0 : index
    %c0_6 = arith.constant 0 : index
    %6 = vector.load %arg4[%c0_5, %c0_6] : memref<16x128xf32, #tpu.memory_space<vmem>>, vector<16x128xf32>
    tpu.vector_store %arg4[%c0_5, %c0_6], %5 {strides = array<i32>} : memref<16x128xf32, #tpu.memory_space<vmem>>, vector<16x128xf32>,
    return
  }
  func.func @transform_0(%arg0: i32) -> (i32, i32) {
    %c0_i32 = arith.constant 0 : i32
    %c0_i32_0 = arith.constant 0 : i32
    return %arg0, %c0_i32 : i32, i32
  }
  func.func @transform_1(%arg0: i32) -> (i32, i32) {
    %c0_i32 = arith.constant 0 : i32
    %c0_i32_0 = arith.constant 0 : i32
    %c0_i32_1 = arith.constant 0 : i32
    return %c0_i32, %c0_i32_0 : i32, i32
  }
  func.func @transform_2(%arg0: i32) -> (i32, i32) {
    %c0_i32 = arith.constant 0 : i32
    %c0_i32_0 = arith.constant 0 : i32
    %c0_i32_1 = arith.constant 0 : i32
    return %c0_i32, %c0_i32_0 : i32, i32
  }
  func.func @transform_3(%arg0: i32) -> (i32, i32) {
    %c0_i32 = arith.constant 0 : i32
    %c0_i32_0 = arith.constant 0 : i32
    return %arg0, %c0_i32 : i32, i32
  }
}

module attributes {stable_mosaic.version = 11 : i64} {
  func.func @_decoder_linear_kernel(%arg0: i32, %arg1: memref<16x32xf32, #tpu.memory_space<vmem>>, %arg2: memref<32x128xf32, #tpu.memory_space<vmem>>, %arg3: memref<1x128xf32, #tpu.memory_space<vmem>>, %arg4: memref<16x128xf32, #tpu.memory_space<vmem>>) attributes {dimension_semantics = [#tpu.dimension_semantics<parallel>], iteration_bounds = array<i64: 1>, scalar_prefetch = 0 : i64, scratch_operands = 0 : i64, tpu.core_type = #tpu.core_type<tc>, window_params = [{transform_indices = @transform_0, window_bounds = array<i64: 16, 32>}, {pipeline_mode = #tpu.pipeline_mode<synchronous>, transform_indices = @transform_1, window_bounds = array<i64: 32, 128>}, {pipeline_mode = #tpu.pipeline_mode<synchronous>, transform_indices = @transform_2, window_bounds = array<i64: 1, 128>}, {transform_indices = @transform_3, window_bounds = array<i64: 16, 128>}]} {
    %c0 = arith.constant 0 : index
    %c0_0 = arith.constant 0 : index
    %0 = vector.load %arg1[%c0, %c0_0] : memref<16x32xf32, #tpu.memory_space<vmem>>, vector<16x32xf32>
    %c0_1 = arith.constant 0 : index
    %c0_2 = arith.constant 0 : index
    %1 = vector.load %arg2[%c0_1, %c0_2] : memref<32x128xf32, #tpu.memory_space<vmem>>, vector<32x128xf32>
    %cst = arith.constant dense<0.000000e+00> : vector<16x128xf32>
    %2 = tpu.matmul %0, %1, %cst {dimension_numbers = #tpu.dot_dimension_numbers<[1], [0], [0], [1], [0, 0, 1, 1], [], []>} : vector<16x32xf32>, vector<32x128xf32>, vector<16x128xf32> -> vector<16x128xf32>
    %c0_3 = arith.constant 0 : index
    %c0_4 = arith.constant 0 : index
    %3 = vector.load %arg3[%c0_3, %c0_4] : memref<1x128xf32, #tpu.memory_space<vmem>>, vector<1x128xf32>
    %4 = vector.broadcast %3 : vector<1x128xf32> to vector<16x128xf32>
    %5 = arith.addf %2, %4 : vector<16x128xf32>
    %c0_5 = arith.constant 0 : index
    %c0_6 = arith.constant 0 : index
    %6 = vector.load %arg4[%c0_5, %c0_6] : memref<16x128xf32, #tpu.memory_space<vmem>>, vector<16x128xf32>
    tpu.vector_store %arg4[%c0_5, %c0_6], %5 {strides = array<i32>} : memref<16x128xf32, #tpu.memory_space<vmem>>, vector<16x128xf32>,
    return
  }
  func.func @transform_0(%arg0: i32) -> (i32, i32) {
    %c0_i32 = arith.constant 0 : i32
    %c0_i32_0 = arith.constant 0 : i32
    return %arg0, %c0_i32 : i32, i32
  }
  func.func @transform_1(%arg0: i32) -> (i32, i32) {
    %c0_i32 = arith.constant 0 : i32
    %c0_i32_0 = arith.constant 0 : i32
    %c0_i32_1 = arith.constant 0 : i32
    return %c0_i32, %c0_i32_0 : i32, i32
  }
  func.func @transform_2(%arg0: i32) -> (i32, i32) {
    %c0_i32 = arith.constant 0 : i32
    %c0_i32_0 = arith.constant 0 : i32
    %c0_i32_1 = arith.constant 0 : i32
    return %c0_i32, %c0_i32_0 : i32, i32
  }
  func.func @transform_3(%arg0: i32) -> (i32, i32) {
    %c0_i32 = arith.constant 0 : i32
    %c0_i32_0 = arith.constant 0 : i32
    return %arg0, %c0_i32 : i32, i32
  }
}

</mosaic_0001>

<llo_original>
// kernel: tpu_custom_call.1
$region0: #{tpu_custom_call.1}
  #allocation0 [shape = 'u32[]', space=smem, size = 0x4, offset = 0x4, fixed_abs, tag = 'smem constant byte address 0x4 - core index']
  #allocation1 [shape = 'u32[144,128]{1,0:T(1,128)}', space=vmem, size = 0x12000, scoped, tag = 'internal scratch']
  %s0 = inlined_call_operand.hbm [shape: f32[16,32], index: 0, kind: input, shape index: {}]
  %s1 = inlined_call_operand.hbm [shape: f32[32,128], index: 1, kind: input, shape index: {}]
  %s2 = inlined_call_operand.vmem [shape: f32[1,128], index: 2, kind: input, shape index: {}]
  %s3 = inlined_call_operand.hbm [shape: f32[16,128], index: 3, kind: output, shape index: {}]
  %s4 = sld [smem:[#allocation0]]
  $region30: #{tpu_custom_call.1} parent=0
    _
  %s6 = ssub.s32 1, %s4
  %s7 = scalar_select 0, %s6, %s4
  $region1: #{tpu_custom_call.1} parent=0
    #allocation2 [shape = 'u8[8192]{0}', space=vmem, size = 0x2000, scoped, tag = 'input window, operand 0, single buffered']
    #allocation3 [shape = 's32[1]{0}', space=sflag, size = 0x4, scoped, tag = 'scoped memory for tpu_custom_call.1']
    #allocation4 [shape = 's32[1]{0}', space=sflag, size = 0x4, scoped, tag = 'scoped memory for tpu_custom_call.1']
    #allocation5 [shape = 'u8[16384]{0}', space=vmem, size = 0x4000, scoped, tag = 'input window, operand 1, single buffered']
    #allocation6 [shape = 's32[1]{0}', space=sflag, size = 0x4, scoped, tag = 'scoped memory for tpu_custom_call.1']
    #allocation7 [shape = 'u8[8192]{0}', space=vmem, size = 0x2000, scoped, tag = 'output window, operand 0, single buffered']
    %8 = vsyncpa [#allocation3], 0
    %9 = vsyncpa [#allocation6], 0
    %10 = vsyncpa [#allocation4], 0
    // Predicated region
    $region2: #{tpu_custom_call.1} parent=1 // pred_check
      _
    $region3: #{tpu_custom_call.1} parent=1 // pred_check_branch
      %12 = sbr.rel (0) target = $region5
    $region4: #{tpu_custom_call.1} parent=1 // pred_region
      %s14 = ssub.s32 256, 256
      %15 = vsyncadd [#allocation3], %s14
      %s16 = sshll.u32 [#allocation2], 4
      %s17 = int_to_ptr.vmem [resolvable:$true] %s16
      %22 = dma.hbm_to_vmem [thread:$0]  %s0, 256, %s17, [#allocation3], 128, 128, 8
    $region5: #{tpu_custom_call.1} parent=1 // pred_fallthru
      _
    // Predicated region
    $region6: #{tpu_custom_call.1} parent=1 // pred_check
      _
    $region7: #{tpu_custom_call.1} parent=1 // pred_check_branch
      %24 = sbr.rel (0) target = $region9
    $region8: #{tpu_custom_call.1} parent=1 // pred_region
      %s26 = ssub.s32 512, 512
      %27 = vsyncadd [#allocation6], %s26
      %s28 = sshll.u32 [#allocation5], 4
      %s29 = int_to_ptr.vmem [resolvable:$true] %s28
      %34 = dma.hbm_to_vmem [thread:$0]  %s1, 512, %s29, [#allocation6], 128, 128, 8
    $region9: #{tpu_custom_call.1} parent=1 // pred_fallthru
      _
    // Predicated region
    $region10: #{tpu_custom_call.1} parent=1 // pred_check
      _
    $region11: #{tpu_custom_call.1} parent=1 // pred_check_branch
      %36 = sbr.rel (0) target = $region13
    $region12: #{tpu_custom_call.1} parent=1 // pred_region
      _
    $region13: #{tpu_custom_call.1} parent=1 // pred_fallthru
      _
    // Predicated region
    $region14: #{tpu_custom_call.1} parent=1 // pred_check
      _
    $region15: #{tpu_custom_call.1} parent=1 // pred_check_branch
      %38 = sbr.rel (0) target = $region17
    $region16: #{tpu_custom_call.1} parent=1 // pred_region
      %39 = dma.done [#allocation3], 256
    $region17: #{tpu_custom_call.1} parent=1 // pred_fallthru
      _
    // Predicated region
    $region18: #{tpu_custom_call.1} parent=1 // pred_check
      _
    $region19: #{tpu_custom_call.1} parent=1 // pred_check_branch
      %41 = sbr.rel (0) target = $region21
    $region20: #{tpu_custom_call.1} parent=1 // pred_region
      %42 = dma.done [#allocation6], 512
    $region21: #{tpu_custom_call.1} parent=1 // pred_fallthru
      _
    %v43 = vld [vmem:[#allocation2] sm:$0xff]
    %v44 = vld [vmem:[#allocation2 + $0x8] sm:$0xff]
    %v45 = vld [vmem:[#allocation5] sm:$0xff]
    %v46 = vld [vmem:[#allocation5 + $0x8] sm:$0xff]
    %v47 = vld [vmem:[#allocation5 + $0x10] sm:$0xff]
    %v48 = vld [vmem:[#allocation5 + $0x18] sm:$0xff]
    %v49 = vld [vmem:[%s2] sm:$0x1]
    %v51 = vlaneseq
    %v52 = vshrl.u32 %v51, 7
    %v53 = vsub.s32 0, %v52
    %v54 = vrot.slane %v49, %v53
    %vm56 = vcmask 261120
    %v58 = vsel %vm56, %v43, 0
    %v61 = vsel %vm56, %v44, 0
    %63 = vmatprep.subr.mxu0 0.0
    %64 = vmatpush1.msra.mxu0 %v45
    %65 = vmatprep.subr.mxu0 0.0
    %66 = vmatpush1.msra.mxu0 %v46
    %67 = vmatprep.subr.mxu0 0.0
    %68 = vmatpush1.msra.mxu0 %v47
    %69 = vmatprep.subr.mxu0 0.0
    %70 = vmatpush1.msra.mxu0 %v48
    %71 = vmatprep.subr.mxu0 0.0
    %72 = vmatpush1.msra.mxu0 0.0
    %73 = vmatprep.subr.mxu0 0.0
    %74 = vmatpush1.msra.mxu0 0.0
    %75 = vmatprep.subr.mxu0 0.0
    %76 = vmatpush1.msra.mxu0 0.0
    %77 = vmatprep.subr.mxu0 0.0
    %78 = vmatpush1.msra.mxu0 0.0
    %79 = vmatprep.subr.mxu0 0.0
    %80 = vmatpush1.msra.mxu0 0.0
    %81 = vmatprep.subr.mxu0 0.0
    %82 = vmatpush1.msra.mxu0 0.0
    %83 = vmatprep.subr.mxu0 0.0
    %84 = vmatpush1.msra.mxu0 0.0
    %85 = vmatprep.subr.mxu0 0.0
    %86 = vmatpush1.msra.mxu0 0.0
    %87 = vmatprep.subr.mxu0 0.0
    %88 = vmatpush1.msra.mxu0 0.0
    %89 = vmatprep.subr.mxu0 0.0
    %90 = vmatpush1.msra.mxu0 0.0
    %91 = vmatprep.subr.mxu0 0.0
    %92 = vmatpush1.msra.mxu0 0.0
    %93 = vmatprep.subr.mxu0 0.0
    %94 = vmatpush1.msra.mxu0 0.0
    %95 = vmatprep.subr.mxu0 0.0
    %96 = vmatpush1.msra.mxu0 0.0
    %97 = vmatprep.subr.mxu0 0.0
    %98 = vmatpush1.msra.mxu0 0.0
    %99 = vmatprep.subr.mxu0 0.0
    %100 = vmatpush1.msra.mxu0 0.0
    %101 = vmatprep.subr.mxu0 0.0
    %102 = vmatpush1.msra.mxu0 0.0
    %103 = vmatprep.subr.mxu0 0.0
    %104 = vmatpush1.msra.mxu0 0.0
    %105 = vmatprep.subr.mxu0 0.0
    %106 = vmatpush1.msra.mxu0 0.0
    %107 = vmatprep.subr.mxu0 0.0
    %108 = vmatpush1.msra.mxu0 0.0
    %109 = vmatprep.subr.mxu0 0.0
    %110 = vmatpush1.msra.mxu0 0.0
    %111 = vmatprep.subr.mxu0 0.0
    %112 = vmatpush1.msra.mxu0 0.0
    %113 = vmatprep.subr.mxu0 0.0
    %114 = vmatpush1.msra.mxu0 0.0
    %115 = vmatprep.subr.mxu0 0.0
    %116 = vmatpush1.msra.mxu0 0.0
    %117 = vmatprep.subr.mxu0 0.0
    %118 = vmatpush1.msra.mxu0 0.0
    %119 = vmatprep.subr.mxu0 0.0
    %120 = vmatpush1.msra.mxu0 0.0
    %121 = vmatprep.subr.mxu0 0.0
    %122 = vmatpush1.msra.mxu0 0.0
    %123 = vmatprep.subr.mxu0 0.0
    %124 = vmatpush1.msra.mxu0 0.0
    %125 = vmatprep.subr.mxu0 0.0
    %126 = vmatpush1.msra.mxu0 0.0
    %127 = vmatprep.mubr.f32.mxu0 0.0
    %128 = vmatmul.mubr.f32.gmra.mrb[0].mxu0 %v58
    %v129 = vpop.f32.mrb[0].mxu0
    %v130 = vadd.f32 %v54, %v129
    %v131 = vpop.f32.mrb[0].mxu0
    %132 = vmatprep.mubr.f32.mxu0 0.0
    %133 = vmatmul.mubr.f32.gmra.mrb[0].mxu0 %v61
    %v134 = vpop.f32.mrb[0].mxu0
    %v135 = vadd.f32 %v54, %v134
    %v136 = vpop.f32.mrb[0].mxu0
    %137 = vdwg.mxu0
    %138 = vst [vmem:[#allocation7] sm:$0xff] %v130
    %139 = vst [vmem:[#allocation7 + $0x8] sm:$0xff] %v135
    // Predicated region
    $region22: #{tpu_custom_call.1} parent=1 // pred_check
      _
    $region23: #{tpu_custom_call.1} parent=1 // pred_check_branch
      %141 = sbr.rel (0) target = $region25
    $region24: #{tpu_custom_call.1} parent=1 // pred_region
      %s143 = ssub.s32 256, 256
      %144 = vsyncadd [#allocation4], %s143
      %s145 = sshll.u32 [#allocation7], 4
      %s146 = int_to_ptr.vmem [resolvable:$true] %s145
      %151 = dma.vmem_to_hbm [thread:$0]  %s146, 256, %s3, [#allocation4], 128, 128, 8
    $region25: #{tpu_custom_call.1} parent=1 // pred_fallthru
      _
    // Predicated region
    $region26: #{tpu_custom_call.1} parent=1 // pred_check
      _
    $region27: #{tpu_custom_call.1} parent=1 // pred_check_branch
      %153 = sbr.rel (0) target = $region29
    $region28: #{tpu_custom_call.1} parent=1 // pred_region
      %154 = dma.done [#allocation4], 256
    $region29: #{tpu_custom_call.1} parent=1 // pred_fallthru
      _
    %155 = vsyncpa [#allocation3], 1
    %156 = vsyncpa [#allocation6], 1
    %157 = vsyncpa [#allocation4], 1

// kernel: tpu_custom_call.1
$region0: #{tpu_custom_call.1}
  #allocation0 [shape = 'u32[]', space=smem, size = 0x4, offset = 0x4, fixed_abs, tag = 'smem constant byte address 0x4 - core index']
  #allocation1 [shape = 'u32[144,128]{1,0:T(1,128)}', space=vmem, size = 0x12000, scoped, tag = 'internal scratch']
  %s0 = inlined_call_operand.hbm [shape: f32[16,32], index: 0, kind: input, shape index: {}]
  %s1 = inlined_call_operand.hbm [shape: f32[32,128], index: 1, kind: input, shape index: {}]
  %s2 = inlined_call_operand.vmem [shape: f32[1,128], index: 2, kind: input, shape index: {}]
  %s3 = inlined_call_operand.hbm [shape: f32[16,128], index: 3, kind: output, shape index: {}]
  %s4 = sld [smem:[#allocation0]]
  $region30: #{tpu_custom_call.1} parent=0
    _
  %s6 = ssub.s32 1, %s4
  %s7 = scalar_select 0, %s6, %s4
  $region1: #{tpu_custom_call.1} parent=0
    #allocation2 [shape = 'u8[8192]{0}', space=vmem, size = 0x2000, scoped, tag = 'input window, operand 0, single buffered']
    #allocation3 [shape = 's32[1]{0}', space=sflag, size = 0x4, scoped, tag = 'scoped memory for tpu_custom_call.1']
    #allocation4 [shape = 's32[1]{0}', space=sflag, size = 0x4, scoped, tag = 'scoped memory for tpu_custom_call.1']
    #allocation5 [shape = 'u8[16384]{0}', space=vmem, size = 0x4000, scoped, tag = 'input window, operand 1, single buffered']
    #allocation6 [shape = 's32[1]{0}', space=sflag, size = 0x4, scoped, tag = 'scoped memory for tpu_custom_call.1']
    #allocation7 [shape = 'u8[8192]{0}', space=vmem, size = 0x2000, scoped, tag = 'output window, operand 0, single buffered']
    %8 = vsyncpa [#allocation3], 0
    %9 = vsyncpa [#allocation6], 0
    %10 = vsyncpa [#allocation4], 0
    // Predicated region
    $region2: #{tpu_custom_call.1} parent=1 // pred_check
      _
    $region3: #{tpu_custom_call.1} parent=1 // pred_check_branch
      %12 = sbr.rel (0) target = $region5
    $region4: #{tpu_custom_call.1} parent=1 // pred_region
      %s14 = ssub.s32 256, 256
      %15 = vsyncadd [#allocation3], %s14
      %s16 = sshll.u32 [#allocation2], 4
      %s17 = int_to_ptr.vmem [resolvable:$true] %s16
      %22 = dma.hbm_to_vmem [thread:$0]  %s0, 256, %s17, [#allocation3], 128, 128, 8
    $region5: #{tpu_custom_call.1} parent=1 // pred_fallthru
      _
    // Predicated region
    $region6: #{tpu_custom_call.1} parent=1 // pred_check
      _
    $region7: #{tpu_custom_call.1} parent=1 // pred_check_branch
      %24 = sbr.rel (0) target = $region9
    $region8: #{tpu_custom_call.1} parent=1 // pred_region
      %s26 = ssub.s32 512, 512
      %27 = vsyncadd [#allocation6], %s26
      %s28 = sshll.u32 [#allocation5], 4
      %s29 = int_to_ptr.vmem [resolvable:$true] %s28
      %34 = dma.hbm_to_vmem [thread:$0]  %s1, 512, %s29, [#allocation6], 128, 128, 8
    $region9: #{tpu_custom_call.1} parent=1 // pred_fallthru
      _
    // Predicated region
    $region10: #{tpu_custom_call.1} parent=1 // pred_check
      _
    $region11: #{tpu_custom_call.1} parent=1 // pred_check_branch
      %36 = sbr.rel (0) target = $region13
    $region12: #{tpu_custom_call.1} parent=1 // pred_region
      _
    $region13: #{tpu_custom_call.1} parent=1 // pred_fallthru
      _
    // Predicated region
    $region14: #{tpu_custom_call.1} parent=1 // pred_check
      _
    $region15: #{tpu_custom_call.1} parent=1 // pred_check_branch
      %38 = sbr.rel (0) target = $region17
    $region16: #{tpu_custom_call.1} parent=1 // pred_region
      %39 = dma.done [#allocation3], 256
    $region17: #{tpu_custom_call.1} parent=1 // pred_fallthru
      _
    // Predicated region
    $region18: #{tpu_custom_call.1} parent=1 // pred_check
      _
    $region19: #{tpu_custom_call.1} parent=1 // pred_check_branch
      %41 = sbr.rel (0) target = $region21
    $region20: #{tpu_custom_call.1} parent=1 // pred_region
      %42 = dma.done [#allocation6], 512
    $region21: #{tpu_custom_call.1} parent=1 // pred_fallthru
      _
    %v43 = vld [vmem:[#allocation2] sm:$0xff]
    %v44 = vld [vmem:[#allocation2 + $0x8] sm:$0xff]
    %v45 = vld [vmem:[#allocation5] sm:$0xff]
    %v46 = vld [vmem:[#allocation5 + $0x8] sm:$0xff]
    %v47 = vld [vmem:[#allocation5 + $0x10] sm:$0xff]
    %v48 = vld [vmem:[#allocation5 + $0x18] sm:$0xff]
    %v49 = vld [vmem:[%s2] sm:$0x1]
    %v51 = vlaneseq
    %v52 = vshrl.u32 %v51, 7
    %v53 = vsub.s32 0, %v52
    %v54 = vrot.slane %v49, %v53
    %vm56 = vcmask 261120
    %v58 = vsel %vm56, %v43, 0
    %v61 = vsel %vm56, %v44, 0
    %63 = vmatprep.subr.mxu0 0.0
    %64 = vmatpush1.msra.mxu0 %v45
    %65 = vmatprep.subr.mxu0 0.0
    %66 = vmatpush1.msra.mxu0 %v46
    %67 = vmatprep.subr.mxu0 0.0
    %68 = vmatpush1.msra.mxu0 %v47
    %69 = vmatprep.subr.mxu0 0.0
    %70 = vmatpush1.msra.mxu0 %v48
    %71 = vmatprep.subr.mxu0 0.0
    %72 = vmatpush1.msra.mxu0 0.0
    %73 = vmatprep.subr.mxu0 0.0
    %74 = vmatpush1.msra.mxu0 0.0
    %75 = vmatprep.subr.mxu0 0.0
    %76 = vmatpush1.msra.mxu0 0.0
    %77 = vmatprep.subr.mxu0 0.0
    %78 = vmatpush1.msra.mxu0 0.0
    %79 = vmatprep.subr.mxu0 0.0
    %80 = vmatpush1.msra.mxu0 0.0
    %81 = vmatprep.subr.mxu0 0.0
    %82 = vmatpush1.msra.mxu0 0.0
    %83 = vmatprep.subr.mxu0 0.0
    %84 = vmatpush1.msra.mxu0 0.0
    %85 = vmatprep.subr.mxu0 0.0
    %86 = vmatpush1.msra.mxu0 0.0
    %87 = vmatprep.subr.mxu0 0.0
    %88 = vmatpush1.msra.mxu0 0.0
    %89 = vmatprep.subr.mxu0 0.0
    %90 = vmatpush1.msra.mxu0 0.0
    %91 = vmatprep.subr.mxu0 0.0
    %92 = vmatpush1.msra.mxu0 0.0
    %93 = vmatprep.subr.mxu0 0.0
    %94 = vmatpush1.msra.mxu0 0.0
    %95 = vmatprep.subr.mxu0 0.0
    %96 = vmatpush1.msra.mxu0 0.0
    %97 = vmatprep.subr.mxu0 0.0
    %98 = vmatpush1.msra.mxu0 0.0
    %99 = vmatprep.subr.mxu0 0.0
    %100 = vmatpush1.msra.mxu0 0.0
    %101 = vmatprep.subr.mxu0 0.0
    %102 = vmatpush1.msra.mxu0 0.0
    %103 = vmatprep.subr.mxu0 0.0
    %104 = vmatpush1.msra.mxu0 0.0
    %105 = vmatprep.subr.mxu0 0.0
    %106 = vmatpush1.msra.mxu0 0.0
    %107 = vmatprep.subr.mxu0 0.0
    %108 = vmatpush1.msra.mxu0 0.0
    %109 = vmatprep.subr.mxu0 0.0
    %110 = vmatpush1.msra.mxu0 0.0
    %111 = vmatprep.subr.mxu0 0.0
    %112 = vmatpush1.msra.mxu0 0.0
    %113 = vmatprep.subr.mxu0 0.0
    %114 = vmatpush1.msra.mxu0 0.0
    %115 = vmatprep.subr.mxu0 0.0
    %116 = vmatpush1.msra.mxu0 0.0
    %117 = vmatprep.subr.mxu0 0.0
    %118 = vmatpush1.msra.mxu0 0.0
    %119 = vmatprep.subr.mxu0 0.0
    %120 = vmatpush1.msra.mxu0 0.0
    %121 = vmatprep.subr.mxu0 0.0
    %122 = vmatpush1.msra.mxu0 0.0
    %123 = vmatprep.subr.mxu0 0.0
    %124 = vmatpush1.msra.mxu0 0.0
    %125 = vmatprep.subr.mxu0 0.0
    %126 = vmatpush1.msra.mxu0 0.0
    %127 = vmatprep.mubr.f32.mxu0 0.0
    %128 = vmatmul.mubr.f32.gmra.mrb[0].mxu0 %v58
    %v129 = vpop.f32.mrb[0].mxu0
    %v130 = vadd.f32 %v54, %v129
    %v131 = vpop.f32.mrb[0].mxu0
    %132 = vmatprep.mubr.f32.mxu0 0.0
    %133 = vmatmul.mubr.f32.gmra.mrb[0].mxu0 %v61
    %v134 = vpop.f32.mrb[0].mxu0
    %v135 = vadd.f32 %v54, %v134
    %v136 = vpop.f32.mrb[0].mxu0
    %137 = vdwg.mxu0
    %138 = vst [vmem:[#allocation7] sm:$0xff] %v130
    %139 = vst [vmem:[#allocation7 + $0x8] sm:$0xff] %v135
    // Predicated region
    $region22: #{tpu_custom_call.1} parent=1 // pred_check
      _
    $region23: #{tpu_custom_call.1} parent=1 // pred_check_branch
      %141 = sbr.rel (0) target = $region25
    $region24: #{tpu_custom_call.1} parent=1 // pred_region
      %s143 = ssub.s32 256, 256
      %144 = vsyncadd [#allocation4], %s143
      %s145 = sshll.u32 [#allocation7], 4
      %s146 = int_to_ptr.vmem [resolvable:$true] %s145
      %151 = dma.vmem_to_hbm [thread:$0]  %s146, 256, %s3, [#allocation4], 128, 128, 8
    $region25: #{tpu_custom_call.1} parent=1 // pred_fallthru
      _
    // Predicated region
    $region26: #{tpu_custom_call.1} parent=1 // pred_check
      _
    $region27: #{tpu_custom_call.1} parent=1 // pred_check_branch
      %153 = sbr.rel (0) target = $region29
    $region28: #{tpu_custom_call.1} parent=1 // pred_region
      %154 = dma.done [#allocation4], 256
    $region29: #{tpu_custom_call.1} parent=1 // pred_fallthru
      _
    %155 = vsyncpa [#allocation3], 1
    %156 = vsyncpa [#allocation6], 1
    %157 = vsyncpa [#allocation4], 1

</llo_original>
